<compile_context>
chip_gen: v7x
topology: tpu7x:2x2x1
jax: 0.10.0
libtpu: 0.0.40
codegen_flags: <defaults>
</compile_context>

<pallas_src>
import functools

import jax
import jax.numpy as jnp
from jax.experimental import pallas as pl
from jax.experimental.pallas import tpu as pltpu


def _po_standard_net_kernel(x_ref,
                            w1_ref, b1_ref,
                            w2_ref, b2_ref,
                            w3_ref, b3_ref,
                            wh_ref, bh_ref,
                            out_ref, *, out_size):
    """One batch tile: 3 hidden layers + fused (y_avg || rho) head."""
    bf16 = jnp.bfloat16

    x = x_ref[...].astype(bf16)
    h = jnp.dot(x, w1_ref[...], preferred_element_type=jnp.float32) + b1_ref[...]
    h = jnp.maximum(h, 0.0).astype(bf16)

    h = jnp.dot(h, w2_ref[...], preferred_element_type=jnp.float32) + b2_ref[...]
    h = jnp.maximum(h, 0.0).astype(bf16)

    h = jnp.dot(h, w3_ref[...], preferred_element_type=jnp.float32) + b3_ref[...]
    h = jnp.maximum(h, 0.0).astype(bf16)

    # Single fused head matmul: columns [0, out_size) are y_avg, columns
    # [out_size, 2*out_size) are rho; remaining lanes are zero padding.
    heads = jnp.dot(h, wh_ref[...], preferred_element_type=jnp.float32) + bh_ref[...]

    # Lane-dense epilogue: apply relu(.) - 2 only to the rho half (no lane
    # slicing inside the kernel -> no sub-128 masked ops).
    col = jax.lax.broadcasted_iota(jnp.int32, heads.shape, 1)
    is_rho = col >= out_size
    out = jnp.where(is_rho, jnp.maximum(heads, 0.0) - 2.0, heads)

    out_ref[...] = out.astype(out_ref.dtype)


def _round_up(n, m):
    return ((n + m - 1) // m) * m


def pack_params(params):
    """Pack raw f32 ([in, out] weights, (1, out) biases) for the kernel.

    - W1's input (contraction) dim is zero-padded to a multiple of 128.
    - W4 and W42 are concatenated along the output dim and lane-padded to a
      multiple of 128; likewise the head biases.
    - All weights are cast to bf16; biases stay f32.
    """
    (w1, b1), (w2, b2), (w3, b3), (w4, b4), (w42, b42) = params
    k = w1.shape[0]
    k_pad = _round_up(max(k, 128), 128)

    w1p = jnp.zeros((k_pad, w1.shape[1]), jnp.bfloat16)
    w1p = w1p.at[:k, :].set(w1.astype(jnp.bfloat16))

    wh = jnp.concatenate([w4, w42], axis=1)              # [128, 2*out]
    bh = jnp.concatenate([b4, b42], axis=1)              # [1, 2*out]
    h_out = _round_up(max(wh.shape[1], 128), 128)
    whp = jnp.zeros((wh.shape[0], h_out), jnp.bfloat16)
    whp = whp.at[:, :wh.shape[1]].set(wh.astype(jnp.bfloat16))
    bhp = jnp.zeros((1, h_out), jnp.float32).at[:, :bh.shape[1]].set(bh)

    return (w1p, b1,
            w2.astype(jnp.bfloat16), b2,
            w3.astype(jnp.bfloat16), b3,
            whp, bhp)


@functools.partial(jax.jit, static_argnames=("out_size", "tile_b"))
def po_standard_net_forward(x, packed, *, out_size, tile_b=None):
    """Runs the fused MLP kernel. x: [B, input_size] f32 -> (y_avg, rho)."""
    w1, b1, w2, b2, w3, b3, wh, bh = packed
    B, k = x.shape
    k_pad = w1.shape[0]
    hl0 = w1.shape[1]           # 512
    hl1 = w2.shape[1]           # 128
    h_out = wh.shape[1]         # lane-padded 2*out_size (>= 128)

    # Batch tiling: 128-row tiles for large batches (fills the MXU rows and
    # shards across TCs); tiny batches use one 8-row-aligned tile.
    if tile_b is None:
        tile_b = 128 if B >= 128 else max(8, _round_up(B, 8))
    b_pad = _round_up(B, tile_b)

    if b_pad != B or k_pad != k:
        x_p = jnp.zeros((b_pad, k_pad), x.dtype).at[:B, :k].set(x)
    else:
        x_p = x

    grid = (b_pad // tile_b,)

    inputs = (x_p, w1, b1, w2, b2, w3, b3, wh, bh)
    flops = 2 * b_pad * (k_pad * hl0 + hl0 * hl1 + hl1 * hl1 + hl1 * h_out)
    bytes_accessed = sum(int(a.size) * a.dtype.itemsize for a in inputs)
    bytes_accessed += b_pad * h_out * 4  # output slab

    batch_blk = lambda i: (i, 0)      # x / output stream with the grid
    resident = lambda i: (0, 0)       # weights & biases stay VMEM-resident

    out = pl.pallas_call(
        functools.partial(_po_standard_net_kernel, out_size=out_size),
        out_shape=jax.ShapeDtypeStruct((b_pad, h_out), jnp.float32),
        grid_spec=pltpu.PrefetchScalarGridSpec(
            num_scalar_prefetch=0,
            grid=grid,
            in_specs=[
                pl.BlockSpec((tile_b, k_pad), batch_blk),   # x tile
                pl.BlockSpec((k_pad, hl0), resident),       # W1
                pl.BlockSpec((1, hl0), resident),           # b1
                pl.BlockSpec((hl0, hl1), resident),         # W2
                pl.BlockSpec((1, hl1), resident),           # b2
                pl.BlockSpec((hl1, hl1), resident),         # W3
                pl.BlockSpec((1, hl1), resident),           # b3
                pl.BlockSpec((hl1, h_out), resident),       # W4 || W42 (padded)
                pl.BlockSpec((1, h_out), resident),         # b4 || b42 (padded)
            ],
            out_specs=pl.BlockSpec((tile_b, h_out), batch_blk),
        ),
        compiler_params=pltpu.CompilerParams(
            dimension_semantics=("parallel",)),
        cost_estimate=pl.CostEstimate(
            flops=flops, transcendentals=0, bytes_accessed=bytes_accessed),
    )(*inputs)

    y_avg = out[:B, :out_size]
    rho = out[:B, out_size:2 * out_size]
    return y_avg, rho


def init_params(key, input_size, output_size):
    """PyTorch-style init: U(-1/sqrt(fan_in), 1/sqrt(fan_in)).

    Weights are stored transposed ([in, out]) for direct x @ W matmuls;
    biases as (1, out) rows.
    """
    hl = [512, 128]
    dims = [(input_size, hl[0]),   # linear1
            (hl[0], hl[1]),        # linear2
            (hl[1], hl[1]),        # linear3
            (hl[1], output_size),  # linear4
            (hl[1], output_size)]  # linear4_2
    params = []
    for (fan_in, fan_out) in dims:
        key, kw, kb = jax.random.split(key, 3)
        bound = 1.0 / (fan_in ** 0.5)
        w = jax.random.uniform(kw, (fan_in, fan_out), jnp.float32, -bound, bound)
        b = jax.random.uniform(kb, (1, fan_out), jnp.float32, -bound, bound)
        params.append((w, b))
    return params


def _reference_forward(x, params):
    """Pure-JAX reference with the same precision recipe as the kernel
    (bf16 weights/activations, f32 accumulation)."""
    (w1, b1), (w2, b2), (w3, b3), (w4, b4), (w42, b42) = params
    bf16 = jnp.bfloat16

    def dot(a, w):
        return jnp.dot(a.astype(bf16), w.astype(bf16),
                       preferred_element_type=jnp.float32)

    h = jnp.maximum(dot(x, w1) + b1, 0.0)
    h = jnp.maximum(dot(h, w2) + b2, 0.0)
    h = jnp.maximum(dot(h, w3) + b3, 0.0)
    y_avg = dot(h, w4) + b4
    rho = jnp.maximum(dot(h, w42) + b42, 0.0) - 2.0
    return y_avg, rho


if __name__ == "__main__":
    key = jax.random.PRNGKey(0)
    input_size = 32
    output_size = 4

    kx, kp, kx2 = jax.random.split(key, 3)
    params = init_params(kp, input_size, output_size)
    packed = pack_params(params)

    # Small batch (single 8-row tile).
    x_small = jax.random.normal(kx, (8, input_size), jnp.float32)
    y_small, rho_small = po_standard_net_forward(
        x_small, packed, out_size=output_size)
    jax.block_until_ready((y_small, rho_small))
    y_ref, rho_ref = _reference_forward(x_small, params)
    assert jnp.allclose(y_small, y_ref, atol=2e-3, rtol=2e-3)
    assert jnp.allclose(rho_small, rho_ref, atol=2e-3, rtol=2e-3)

    # Larger batch exercises the streaming batch grid (128-row tiles,
    # VMEM-resident weights, "parallel" axis).
    x_big = jax.random.normal(kx2, (256, input_size), jnp.float32)
    y_big, rho_big = po_standard_net_forward(
        x_big, packed, out_size=output_size)
    jax.block_until_ready((y_big, rho_big))
    y_ref2, rho_ref2 = _reference_forward(x_big, params)
    assert jnp.allclose(y_big, y_ref2, atol=2e-3, rtol=2e-3)
    assert jnp.allclose(rho_big, rho_ref2, atol=2e-3, rtol=2e-3)

    # TODO(synk): forward_dist's torch.normal sampling path is not part of the
    # deterministic forward(); it could be added with pltpu.prng_* if needed.

    print("KERNEL_OK")
</pallas_src>

<mosaic_0001>
module attributes {stable_mosaic.version = 11 : i64} {
  func.func @_po_standard_net_kernel(%arg0: i32, %arg1: memref<8x128xf32, #tpu.memory_space<vmem>>, %arg2: memref<128x512xbf16, #tpu.memory_space<vmem>>, %arg3: memref<1x512xf32, #tpu.memory_space<vmem>>, %arg4: memref<512x128xbf16, #tpu.memory_space<vmem>>, %arg5: memref<1x128xf32, #tpu.memory_space<vmem>>, %arg6: memref<128x128xbf16, #tpu.memory_space<vmem>>, %arg7: memref<1x128xf32, #tpu.memory_space<vmem>>, %arg8: memref<128x128xbf16, #tpu.memory_space<vmem>>, %arg9: memref<1x128xf32, #tpu.memory_space<vmem>>, %arg10: memref<8x128xf32, #tpu.memory_space<vmem>>) attributes {dimension_semantics = [#tpu.dimension_semantics<parallel>], iteration_bounds = array<i64: 1>, scalar_prefetch = 0 : i64, scratch_operands = 0 : i64, tpu.core_type = #tpu.core_type<tc>, window_params = [{transform_indices = @transform_0, window_bounds = array<i64: 8, 128>}, {pipeline_mode = #tpu.pipeline_mode<synchronous>, transform_indices = @transform_1, window_bounds = array<i64: 128, 512>}, {pipeline_mode = #tpu.pipeline_mode<synchronous>, transform_indices = @transform_2, window_bounds = array<i64: 1, 512>}, {pipeline_mode = #tpu.pipeline_mode<synchronous>, transform_indices = @transform_3, window_bounds = array<i64: 512, 128>}, {pipeline_mode = #tpu.pipeline_mode<synchronous>, transform_indices = @transform_4, window_bounds = array<i64: 1, 128>}, {pipeline_mode = #tpu.pipeline_mode<synchronous>, transform_indices = @transform_5, window_bounds = array<i64: 128, 128>}, {pipeline_mode = #tpu.pipeline_mode<synchronous>, transform_indices = @transform_6, window_bounds = array<i64: 1, 128>}, {pipeline_mode = #tpu.pipeline_mode<synchronous>, transform_indices = @transform_7, window_bounds = array<i64: 128, 128>}, {pipeline_mode = #tpu.pipeline_mode<synchronous>, transform_indices = @transform_8, window_bounds = array<i64: 1, 128>}, {transform_indices = @transform_9, window_bounds = array<i64: 8, 128>}]} {
    %c0 = arith.constant 0 : index
    %c0_0 = arith.constant 0 : index
    %0 = vector.load %arg1[%c0, %c0_0] : memref<8x128xf32, #tpu.memory_space<vmem>>, vector<8x128xf32>
    %1 = arith.truncf %0 : vector<8x128xf32> to vector<8x128xbf16>
    %c0_1 = arith.constant 0 : index
    %c0_2 = arith.constant 0 : index
    %2 = vector.load %arg2[%c0_1, %c0_2] : memref<128x512xbf16, #tpu.memory_space<vmem>>, vector<128x512xbf16>
    %cst = arith.constant dense<0.000000e+00> : vector<8x512xf32>
    %3 = tpu.matmul %1, %2, %cst {dimension_numbers = #tpu.dot_dimension_numbers<[1], [0], [0], [1], [0, 0, 1, 1], [], []>} : vector<8x128xbf16>, vector<128x512xbf16>, vector<8x512xf32> -> vector<8x512xf32>
    %c0_3 = arith.constant 0 : index
    %c0_4 = arith.constant 0 : index
    %4 = vector.load %arg3[%c0_3, %c0_4] : memref<1x512xf32, #tpu.memory_space<vmem>>, vector<1x512xf32>
    %5 = vector.broadcast %4 : vector<1x512xf32> to vector<8x512xf32>
    %6 = arith.addf %3, %5 : vector<8x512xf32>
    %cst_5 = arith.constant 0.000000e+00 : f32
    %7 = vector.broadcast %cst_5 : f32 to vector<8x512xf32>
    %8 = arith.maximumf %6, %7 : vector<8x512xf32>
    %9 = arith.truncf %8 : vector<8x512xf32> to vector<8x512xbf16>
    %c0_6 = arith.constant 0 : index
    %c0_7 = arith.constant 0 : index
    %10 = vector.load %arg4[%c0_6, %c0_7] : memref<512x128xbf16, #tpu.memory_space<vmem>>, vector<512x128xbf16>
    %cst_8 = arith.constant dense<0.000000e+00> : vector<8x128xf32>
    %11 = tpu.matmul %9, %10, %cst_8 {dimension_numbers = #tpu.dot_dimension_numbers<[1], [0], [0], [1], [0, 0, 1, 1], [], []>} : vector<8x512xbf16>, vector<512x128xbf16>, vector<8x128xf32> -> vector<8x128xf32>
    %c0_9 = arith.constant 0 : index
    %c0_10 = arith.constant 0 : index
    %12 = vector.load %arg5[%c0_9, %c0_10] : memref<1x128xf32, #tpu.memory_space<vmem>>, vector<1x128xf32>
    %13 = vector.broadcast %12 : vector<1x128xf32> to vector<8x128xf32>
    %14 = arith.addf %11, %13 : vector<8x128xf32>
    %cst_11 = arith.constant 0.000000e+00 : f32
    %15 = vector.broadcast %cst_11 : f32 to vector<8x128xf32>
    %16 = arith.maximumf %14, %15 : vector<8x128xf32>
    %17 = arith.truncf %16 : vector<8x128xf32> to vector<8x128xbf16>
    %c0_12 = arith.constant 0 : index
    %c0_13 = arith.constant 0 : index
    %18 = vector.load %arg6[%c0_12, %c0_13] : memref<128x128xbf16, #tpu.memory_space<vmem>>, vector<128x128xbf16>
    %cst_14 = arith.constant dense<0.000000e+00> : vector<8x128xf32>
    %19 = tpu.matmul %17, %18, %cst_14 {dimension_numbers = #tpu.dot_dimension_numbers<[1], [0], [0], [1], [0, 0, 1, 1], [], []>} : vector<8x128xbf16>, vector<128x128xbf16>, vector<8x128xf32> -> vector<8x128xf32>
    %c0_15 = arith.constant 0 : index
    %c0_16 = arith.constant 0 : index
    %20 = vector.load %arg7[%c0_15, %c0_16] : memref<1x128xf32, #tpu.memory_space<vmem>>, vector<1x128xf32>
    %21 = vector.broadcast %20 : vector<1x128xf32> to vector<8x128xf32>
    %22 = arith.addf %19, %21 : vector<8x128xf32>
    %cst_17 = arith.constant 0.000000e+00 : f32
    %23 = vector.broadcast %cst_17 : f32 to vector<8x128xf32>
    %24 = arith.maximumf %22, %23 : vector<8x128xf32>
    %25 = arith.truncf %24 : vector<8x128xf32> to vector<8x128xbf16>
    %c0_18 = arith.constant 0 : index
    %c0_19 = arith.constant 0 : index
    %26 = vector.load %arg8[%c0_18, %c0_19] : memref<128x128xbf16, #tpu.memory_space<vmem>>, vector<128x128xbf16>
    %cst_20 = arith.constant dense<0.000000e+00> : vector<8x128xf32>
    %27 = tpu.matmul %25, %26, %cst_20 {dimension_numbers = #tpu.dot_dimension_numbers<[1], [0], [0], [1], [0, 0, 1, 1], [], []>} : vector<8x128xbf16>, vector<128x128xbf16>, vector<8x128xf32> -> vector<8x128xf32>
    %c0_21 = arith.constant 0 : index
    %c0_22 = arith.constant 0 : index
    %28 = vector.load %arg9[%c0_21, %c0_22] : memref<1x128xf32, #tpu.memory_space<vmem>>, vector<1x128xf32>
    %29 = vector.broadcast %28 : vector<1x128xf32> to vector<8x128xf32>
    %30 = arith.addf %27, %29 : vector<8x128xf32>
    %31 = tpu.iota {dimensions = array<i32: 1>} : vector<8x128xi32>
    %c4_i32 = arith.constant 4 : i32
    %32 = vector.broadcast %c4_i32 : i32 to vector<8x128xi32>
    %33 = arith.cmpi sge, %31, %32 : vector<8x128xi32>
    %cst_23 = arith.constant 0.000000e+00 : f32
    %34 = vector.broadcast %cst_23 : f32 to vector<8x128xf32>
    %35 = arith.maximumf %30, %34 : vector<8x128xf32>
    %cst_24 = arith.constant 2.000000e+00 : f32
    %36 = vector.broadcast %cst_24 : f32 to vector<8x128xf32>
    %37 = arith.subf %35, %36 : vector<8x128xf32>
    %38 = arith.select %33, %37, %30 : vector<8x128xi1>, vector<8x128xf32>
    %c0_25 = arith.constant 0 : index
    %c0_26 = arith.constant 0 : index
    %39 = vector.load %arg10[%c0_25, %c0_26] : memref<8x128xf32, #tpu.memory_space<vmem>>, vector<8x128xf32>
    tpu.vector_store %arg10[%c0_25, %c0_26], %38 {strides = array<i32>} : memref<8x128xf32, #tpu.memory_space<vmem>>, vector<8x128xf32>,
    return
  }
  func.func @transform_0(%arg0: i32) -> (i32, i32) {
    %c0_i32 = arith.constant 0 : i32
    %c0_i32_0 = arith.constant 0 : i32
    return %arg0, %c0_i32 : i32, i32
  }
  func.func @transform_1(%arg0: i32) -> (i32, i32) {
    %c0_i32 = arith.constant 0 : i32
    %c0_i32_0 = arith.constant 0 : i32
    %c0_i32_1 = arith.constant 0 : i32
    return %c0_i32, %c0_i32_0 : i32, i32
  }
  func.func @transform_2(%arg0: i32) -> (i32, i32) {
    %c0_i32 = arith.constant 0 : i32
    %c0_i32_0 = arith.constant 0 : i32
    %c0_i32_1 = arith.constant 0 : i32
    return %c0_i32, %c0_i32_0 : i32, i32
  }
  func.func @transform_3(%arg0: i32) -> (i32, i32) {
    %c0_i32 = arith.constant 0 : i32
    %c0_i32_0 = arith.constant 0 : i32
    %c0_i32_1 = arith.constant 0 : i32
    return %c0_i32, %c0_i32_0 : i32, i32
  }
  func.func @transform_4(%arg0: i32) -> (i32, i32) {
    %c0_i32 = arith.constant 0 : i32
    %c0_i32_0 = arith.constant 0 : i32
    %c0_i32_1 = arith.constant 0 : i32
    return %c0_i32, %c0_i32_0 : i32, i32
  }
  func.func @transform_5(%arg0: i32) -> (i32, i32) {
    %c0_i32 = arith.constant 0 : i32
    %c0_i32_0 = arith.constant 0 : i32
    %c0_i32_1 = arith.constant 0 : i32
    return %c0_i32, %c0_i32_0 : i32, i32
  }
  func.func @transform_6(%arg0: i32) -> (i32, i32) {
    %c0_i32 = arith.constant 0 : i32
    %c0_i32_0 = arith.constant 0 : i32
    %c0_i32_1 = arith.constant 0 : i32
    return %c0_i32, %c0_i32_0 : i32, i32
  }
  func.func @transform_7(%arg0: i32) -> (i32, i32) {
    %c0_i32 = arith.constant 0 : i32
    %c0_i32_0 = arith.constant 0 : i32
    %c0_i32_1 = arith.constant 0 : i32
    return %c0_i32, %c0_i32_0 : i32, i32
  }
  func.func @transform_8(%arg0: i32) -> (i32, i32) {
    %c0_i32 = arith.constant 0 : i32
    %c0_i32_0 = arith.constant 0 : i32
    %c0_i32_1 = arith.constant 0 : i32
    return %c0_i32, %c0_i32_0 : i32, i32
  }
  func.func @transform_9(%arg0: i32) -> (i32, i32) {
    %c0_i32 = arith.constant 0 : i32
    %c0_i32_0 = arith.constant 0 : i32
    return %arg0, %c0_i32 : i32, i32
  }
}

</mosaic_0001>

<llo_original>
// kernel: po_standard_net_forward.1
$region0: #{po_standard_net_forward.1}
  #allocation0 [shape = 'u32[]', space=smem, size = 0x4, offset = 0x4, fixed_abs, tag = 'smem constant byte address 0x4 - core index']
  #allocation1 [shape = 'u32[144,128]{1,0:T(1,128)}', space=vmem, size = 0x12000, scoped, tag = 'internal scratch']
  %s0 = inlined_call_operand.vmem [shape: f32[8,128], index: 0, kind: input, shape index: {}]
  %s1 = inlined_call_operand.hbm [shape: bf16[128,512], index: 1, kind: input, shape index: {}]
  %s2 = inlined_call_operand.hbm [shape: f32[1,512], index: 2, kind: input, shape index: {}]
  %s3 = inlined_call_operand.hbm [shape: bf16[512,128], index: 3, kind: input, shape index: {}]
  %s4 = inlined_call_operand.hbm [shape: f32[1,128], index: 4, kind: input, shape index: {}]
  %s5 = inlined_call_operand.hbm [shape: bf16[128,128], index: 5, kind: input, shape index: {}]
  %s6 = inlined_call_operand.hbm [shape: f32[1,128], index: 6, kind: input, shape index: {}]
  %s7 = inlined_call_operand.vmem [shape: bf16[128,128], index: 7, kind: input, shape index: {}]
  %s8 = inlined_call_operand.vmem [shape: f32[1,128], index: 8, kind: input, shape index: {}]
  %s9 = inlined_call_operand.vmem [shape: f32[8,128], index: 9, kind: output, shape index: {}]
  %s10 = sld [smem:[#allocation0]]
  $region70: #{po_standard_net_forward.1} parent=0
    _
  %s12 = ssub.s32 1, %s10
  %s13 = scalar_select 0, %s12, %s10
  $region1: #{po_standard_net_forward.1} parent=0
    #allocation2 [shape = 'u8[131072]{0}', space=vmem, size = 0x20000, scoped, tag = 'input window, operand 1, single buffered']
    #allocation3 [shape = 's32[1]{0}', space=sflag, size = 0x4, scoped, tag = 'scoped memory for po_standard_net_forward.1']
    #allocation4 [shape = 'u8[2048]{0}', space=vmem, size = 0x800, scoped, tag = 'input window, operand 2, single buffered']
    #allocation5 [shape = 's32[1]{0}', space=sflag, size = 0x4, scoped, tag = 'scoped memory for po_standard_net_forward.1']
    #allocation6 [shape = 'u8[131072]{0}', space=vmem, size = 0x20000, scoped, tag = 'input window, operand 3, single buffered']
    #allocation7 [shape = 'u8[512]{0}', space=vmem, size = 0x400, scoped, tag = 'input window, operand 4, single buffered']
    #allocation8 [shape = 's32[1]{0}', space=sflag, size = 0x4, scoped, tag = 'scoped memory for po_standard_net_forward.1']
    #allocation9 [shape = 'u8[32768]{0}', space=vmem, size = 0x8000, scoped, tag = 'input window, operand 5, single buffered']
    #allocation10 [shape = 'u8[512]{0}', space=vmem, size = 0x400, scoped, tag = 'input window, operand 6, single buffered']
    #allocation11 [shape = 's32[1]{0}', space=sflag, size = 0x4, scoped, tag = 'scoped memory for po_standard_net_forward.1']
    %14 = vsyncpa [#allocation3], 0
    %15 = vsyncpa [#allocation5], 0
    %16 = vsyncpa [#allocation8], 0
    %17 = vsyncpa [#allocation11], 0
    // Predicated region
    $region2: #{po_standard_net_forward.1} parent=1 // pred_check
      _
    $region3: #{po_standard_net_forward.1} parent=1 // pred_check_branch
      %19 = sbr.rel (0) target = $region5
    $region4: #{po_standard_net_forward.1} parent=1 // pred_region
      _
    $region5: #{po_standard_net_forward.1} parent=1 // pred_fallthru
      _
    // Predicated region
    $region6: #{po_standard_net_forward.1} parent=1 // pred_check
      _
    $region7: #{po_standard_net_forward.1} parent=1 // pred_check_branch
      %21 = sbr.rel (0) target = $region9
    $region8: #{po_standard_net_forward.1} parent=1 // pred_region
      %s23 = ssub.s32 4096, 4096
      %24 = vsyncadd [#allocation3], %s23
      %s25 = sshll.u32 [#allocation2], 4
      %s26 = int_to_ptr.vmem [resolvable:$true] %s25
      %31 = dma.hbm_to_vmem [thread:$0]  %s1, 4096, %s26, [#allocation3], 256, 256, 16
    $region9: #{po_standard_net_forward.1} parent=1 // pred_fallthru
      _
    // Predicated region
    $region10: #{po_standard_net_forward.1} parent=1 // pred_check
      _
    $region11: #{po_standard_net_forward.1} parent=1 // pred_check_branch
      %33 = sbr.rel (0) target = $region13
    $region12: #{po_standard_net_forward.1} parent=1 // pred_region
      %s35 = ssub.s32 64, 64
      %36 = vsyncadd [#allocation5], %s35
      %s38 = sshll.u32 [#allocation4], 4
      %s39 = int_to_ptr.vmem [resolvable:$true] %s38
      %41 = dma.hbm_to_vmem [thread:$0]  %s2, 64, %s39, [#allocation5]
    $region13: #{po_standard_net_forward.1} parent=1 // pred_fallthru
      _
    // Predicated region
    $region14: #{po_standard_net_forward.1} parent=1 // pred_check
      _
    $region15: #{po_standard_net_forward.1} parent=1 // pred_check_branch
      %43 = sbr.rel (0) target = $region17
    $region16: #{po_standard_net_forward.1} parent=1 // pred_region
      %s45 = ssub.s32 4096, 4096
      %46 = vsyncadd [#allocation5], %s45
      %s47 = sshll.u32 [#allocation6], 4
      %s48 = int_to_ptr.vmem [resolvable:$true] %s47
      %53 = dma.hbm_to_vmem [thread:$0]  %s3, 4096, %s48, [#allocation5], 64, 64, 4
    $region17: #{po_standard_net_forward.1} parent=1 // pred_fallthru
      _
    // Predicated region
    $region18: #{po_standard_net_forward.1} parent=1 // pred_check
      _
    $region19: #{po_standard_net_forward.1} parent=1 // pred_check_branch
      %55 = sbr.rel (0) target = $region21
    $region20: #{po_standard_net_forward.1} parent=1 // pred_region
      %s57 = ssub.s32 16, 16
      %58 = vsyncadd [#allocation8], %s57
      %s60 = sshll.u32 [#allocation7], 4
      %s61 = int_to_ptr.vmem [resolvable:$true] %s60
      %63 = dma.hbm_to_vmem [thread:$0]  %s4, 16, %s61, [#allocation8]
    $region21: #{po_standard_net_forward.1} parent=1 // pred_fallthru
      _
    // Predicated region
    $region22: #{po_standard_net_forward.1} parent=1 // pred_check
      _
    $region23: #{po_standard_net_forward.1} parent=1 // pred_check_branch
      %65 = sbr.rel (0) target = $region25
    $region24: #{po_standard_net_forward.1} parent=1 // pred_region
      %s67 = ssub.s32 1024, 1024
      %68 = vsyncadd [#allocation8], %s67
      %s69 = sshll.u32 [#allocation9], 4
      %s70 = int_to_ptr.vmem [resolvable:$true] %s69
      %75 = dma.hbm_to_vmem [thread:$0]  %s5, 1024, %s70, [#allocation8], 64, 64, 4
    $region25: #{po_standard_net_forward.1} parent=1 // pred_fallthru
      _
    // Predicated region
    $region26: #{po_standard_net_forward.1} parent=1 // pred_check
      _
    $region27: #{po_standard_net_forward.1} parent=1 // pred_check_branch
      %77 = sbr.rel (0) target = $region29
    $region28: #{po_standard_net_forward.1} parent=1 // pred_region
      %s79 = ssub.s32 16, 16
      %80 = vsyncadd [#allocation11], %s79
      %s82 = sshll.u32 [#allocation10], 4
      %s83 = int_to_ptr.vmem [resolvable:$true] %s82
      %85 = dma.hbm_to_vmem [thread:$0]  %s6, 16, %s83, [#allocation11]
    $region29: #{po_standard_net_forward.1} parent=1 // pred_fallthru
      _
    // Predicated region
    $region30: #{po_standard_net_forward.1} parent=1 // pred_check
      _
    $region31: #{po_standard_net_forward.1} parent=1 // pred_check_branch
      %87 = sbr.rel (0) target = $region33
    $region32: #{po_standard_net_forward.1} parent=1 // pred_region
      _
    $region33: #{po_standard_net_forward.1} parent=1 // pred_fallthru
      _
    // Predicated region
    $region34: #{po_standard_net_forward.1} parent=1 // pred_check
      _
    $region35: #{po_standard_net_forward.1} parent=1 // pred_check_branch
      %89 = sbr.rel (0) target = $region37
    $region36: #{po_standard_net_forward.1} parent=1 // pred_region
      _
    $region37: #{po_standard_net_forward.1} parent=1 // pred_fallthru
      _
    // Predicated region
    $region38: #{po_standard_net_forward.1} parent=1 // pred_check
      _
    $region39: #{po_standard_net_forward.1} parent=1 // pred_check_branch
      %91 = sbr.rel (0) target = $region41
    $region40: #{po_standard_net_forward.1} parent=1 // pred_region
      %92 = dma.done [#allocation3], 4096
    $region41: #{po_standard_net_forward.1} parent=1 // pred_fallthru
      _
    // Predicated region
    $region42: #{po_standard_net_forward.1} parent=1 // pred_check
      _
    $region43: #{po_standard_net_forward.1} parent=1 // pred_check_branch
      %94 = sbr.rel (0) target = $region45
    $region44: #{po_standard_net_forward.1} parent=1 // pred_region
      %95 = dma.done [#allocation5], 64
    $region45: #{po_standard_net_forward.1} parent=1 // pred_fallthru
      _
    // Predicated region
    $region46: #{po_standard_net_forward.1} parent=1 // pred_check
      _
    $region47: #{po_standard_net_forward.1} parent=1 // pred_check_branch
      %97 = sbr.rel (0) target = $region49
    $region48: #{po_standard_net_forward.1} parent=1 // pred_region
      %98 = dma.done [#allocation5], 4096
    $region49: #{po_standard_net_forward.1} parent=1 // pred_fallthru
      _
    // Predicated region
    $region50: #{po_standard_net_forward.1} parent=1 // pred_check
      _
    $region51: #{po_standard_net_forward.1} parent=1 // pred_check_branch
      %100 = sbr.rel (0) target = $region53
    $region52: #{po_standard_net_forward.1} parent=1 // pred_region
      %101 = dma.done [#allocation8], 16
    $region53: #{po_standard_net_forward.1} parent=1 // pred_fallthru
      _
    // Predicated region
    $region54: #{po_standard_net_forward.1} parent=1 // pred_check
      _
    $region55: #{po_standard_net_forward.1} parent=1 // pred_check_branch
      %103 = sbr.rel (0) target = $region57
    $region56: #{po_standard_net_forward.1} parent=1 // pred_region
      %104 = dma.done [#allocation8], 1024
    $region57: #{po_standard_net_forward.1} parent=1 // pred_fallthru
      _
    // Predicated region
    $region58: #{po_standard_net_forward.1} parent=1 // pred_check
      _
    $region59: #{po_standard_net_forward.1} parent=1 // pred_check_branch
      %106 = sbr.rel (0) target = $region61
    $region60: #{po_standard_net_forward.1} parent=1 // pred_region
      %107 = dma.done [#allocation11], 16
    $region61: #{po_standard_net_forward.1} parent=1 // pred_fallthru
      _
    %v109 = vld [vmem:[%s0] sm:$0xff]
    %v110 = vpack.c.bf16 %v109, %v109
    %v111 = vld [vmem:[#allocation2] sm:$0xff]
    %v112 = vld [vmem:[#allocation2 + $0x8] sm:$0xff]
    %v113 = vld [vmem:[#allocation2 + $0x10] sm:$0xff]
    %v114 = vld [vmem:[#allocation2 + $0x18] sm:$0xff]
    %v115 = vld [vmem:[#allocation2 + $0x20] sm:$0xff]
    %v116 = vld [vmem:[#allocation2 + $0x28] sm:$0xff]
    %v117 = vld [vmem:[#allocation2 + $0x30] sm:$0xff]
    %v118 = vld [vmem:[#allocation2 + $0x38] sm:$0xff]
    %v119 = vld [vmem:[#allocation2 + $0x40] sm:$0xff]
    %v120 = vld [vmem:[#allocation2 + $0x48] sm:$0xff]
    %v121 = vld [vmem:[#allocation2 + $0x50] sm:$0xff]
    %v122 = vld [vmem:[#allocation2 + $0x58] sm:$0xff]
    %v123 = vld [vmem:[#allocation2 + $0x60] sm:$0xff]
    %v124 = vld [vmem:[#allocation2 + $0x68] sm:$0xff]
    %v125 = vld [vmem:[#allocation2 + $0x70] sm:$0xff]
    %v126 = vld [vmem:[#allocation2 + $0x78] sm:$0xff]
    %v127 = vld [vmem:[#allocation2 + $0x80] sm:$0xff]
    %v128 = vld [vmem:[#allocation2 + $0x88] sm:$0xff]
    %v129 = vld [vmem:[#allocation2 + $0x90] sm:$0xff]
    %v130 = vld [vmem:[#allocation2 + $0x98] sm:$0xff]
    %v131 = vld [vmem:[#allocation2 + $0xa0] sm:$0xff]
    %v132 = vld [vmem:[#allocation2 + $0xa8] sm:$0xff]
    %v133 = vld [vmem:[#allocation2 + $0xb0] sm:$0xff]
    %v134 = vld [vmem:[#allocation2 + $0xb8] sm:$0xff]
    %v135 = vld [vmem:[#allocation2 + $0xc0] sm:$0xff]
    %v136 = vld [vmem:[#allocation2 + $0xc8] sm:$0xff]
    %v137 = vld [vmem:[#allocation2 + $0xd0] sm:$0xff]
    %v138 = vld [vmem:[#allocation2 + $0xd8] sm:$0xff]
    %v139 = vld [vmem:[#allocation2 + $0xe0] sm:$0xff]
    %v140 = vld [vmem:[#allocation2 + $0xe8] sm:$0xff]
    %v141 = vld [vmem:[#allocation2 + $0xf0] sm:$0xff]
    %v142 = vld [vmem:[#allocation2 + $0xf8] sm:$0xff]
    %v143 = vld [vmem:[#allocation4] sm:$0xf]
    %v145 = vlaneseq
    %v146 = vshrl.u32 %v145, 7
    %v147 = vsub.s32 0, %v146
    %v148 = vrot.slane %v143, %v147
    %v149 = vlaneseq
    %v150 = vshrl.u32 %v149, 7
    %v151 = vsub.s32 1, %v150
    %v152 = vrot.slane %v143, %v151
    %v153 = vlaneseq
    %v154 = vshrl.u32 %v153, 7
    %v155 = vsub.s32 2, %v154
    %v156 = vrot.slane %v143, %v155
    %v157 = vlaneseq
    %v158 = vshrl.u32 %v157, 7
    %v159 = vsub.s32 3, %v158
    %v160 = vrot.slane %v143, %v159
    %v197 = vunpack.c.l.b16 %v111
    %v198 = vunpack.c.h.b16 %v111
    %v199 = vunpack.c.l.b16 %v112
    %v200 = vunpack.c.h.b16 %v112
    %v201 = vunpack.c.l.b16 %v113
    %v202 = vunpack.c.h.b16 %v113
    %v203 = vunpack.c.l.b16 %v114
    %v204 = vunpack.c.h.b16 %v114
    %v205 = vunpack.c.l.b16 %v115
    %v206 = vunpack.c.h.b16 %v115
    %v207 = vunpack.c.l.b16 %v116
    %v208 = vunpack.c.h.b16 %v116
    %v209 = vunpack.c.l.b16 %v117
    %v210 = vunpack.c.h.b16 %v117
    %v211 = vunpack.c.l.b16 %v118
    %v212 = vunpack.c.h.b16 %v118
    %v213 = vunpack.c.l.b16 %v119
    %v214 = vunpack.c.h.b16 %v119
    %v215 = vunpack.c.l.b16 %v120
    %v216 = vunpack.c.h.b16 %v120
    %v217 = vunpack.c.l.b16 %v121
    %v218 = vunpack.c.h.b16 %v121
    %v219 = vunpack.c.l.b16 %v122
    %v220 = vunpack.c.h.b16 %v122
    %v221 = vunpack.c.l.b16 %v123
    %v222 = vunpack.c.h.b16 %v123
    %v223 = vunpack.c.l.b16 %v124
    %v224 = vunpack.c.h.b16 %v124
    %v225 = vunpack.c.l.b16 %v125
    %v226 = vunpack.c.h.b16 %v125
    %v227 = vunpack.c.l.b16 %v126
    %v228 = vunpack.c.h.b16 %v126
    %v229 = vunpack.c.l.b16 %v127
    %v230 = vunpack.c.h.b16 %v127
    %v231 = vunpack.c.l.b16 %v128
    %v232 = vunpack.c.h.b16 %v128
    %v233 = vunpack.c.l.b16 %v129
    %v234 = vunpack.c.h.b16 %v129
    %v235 = vunpack.c.l.b16 %v130
    %v236 = vunpack.c.h.b16 %v130
    %v237 = vunpack.c.l.b16 %v131
    %v238 = vunpack.c.h.b16 %v131
    %v239 = vunpack.c.l.b16 %v132
    %v240 = vunpack.c.h.b16 %v132
    %v241 = vunpack.c.l.b16 %v133
    %v242 = vunpack.c.h.b16 %v133
    %v243 = vunpack.c.l.b16 %v134
    %v244 = vunpack.c.h.b16 %v134
    %v245 = vunpack.c.l.b16 %v135
    %v246 = vunpack.c.h.b16 %v135
    %v247 = vunpack.c.l.b16 %v136
    %v248 = vunpack.c.h.b16 %v136
    %v249 = vunpack.c.l.b16 %v137
    %v250 = vunpack.c.h.b16 %v137
    %v251 = vunpack.c.l.b16 %v138
    %v252 = vunpack.c.h.b16 %v138
    %v253 = vunpack.c.l.b16 %v139
    %v254 = vunpack.c.h.b16 %v139
    %v255 = vunpack.c.l.b16 %v140
    %v256 = vunpack.c.h.b16 %v140
    %v257 = vunpack.c.l.b16 %v141
    %v258 = vunpack.c.h.b16 %v141
    %v259 = vunpack.c.l.b16 %v142
    %v260 = vunpack.c.h.b16 %v142
    %v261 = vpack.c.b16 %v201, %v197
    %v262 = vpack.c.b16 %v202, %v198
    %v263 = vpack.c.b16 %v203, %v199
    %v264 = vpack.c.b16 %v204, %v200
    %v265 = vpack.c.b16 %v209, %v205
    %v266 = vpack.c.b16 %v210, %v206
    %v267 = vpack.c.b16 %v211, %v207
    %v268 = vpack.c.b16 %v212, %v208
    %v269 = vpack.c.b16 %v217, %v213
    %v270 = vpack.c.b16 %v218, %v214
    %v271 = vpack.c.b16 %v219, %v215
    %v272 = vpack.c.b16 %v220, %v216
    %v273 = vpack.c.b16 %v225, %v221
    %v274 = vpack.c.b16 %v226, %v222
    %v275 = vpack.c.b16 %v227, %v223
    %v276 = vpack.c.b16 %v228, %v224
    %v277 = vpack.c.b16 %v233, %v229
    %v278 = vpack.c.b16 %v234, %v230
    %v279 = vpack.c.b16 %v235, %v231
    %v280 = vpack.c.b16 %v236, %v232
    %v281 = vpack.c.b16 %v241, %v237
    %v282 = vpack.c.b16 %v242, %v238
    %v283 = vpack.c.b16 %v243, %v239
    %v284 = vpack.c.b16 %v244, %v240
    %v285 = vpack.c.b16 %v249, %v245
    %v286 = vpack.c.b16 %v250, %v246
    %v287 = vpack.c.b16 %v251, %v247
    %v288 = vpack.c.b16 %v252, %v248
    %v289 = vpack.c.b16 %v257, %v253
    %v290 = vpack.c.b16 %v258, %v254
    %v291 = vpack.c.b16 %v259, %v255
    %v292 = vpack.c.b16 %v260, %v256
    %325 = vmatprep.subr.bf16.mxu0 %v262
    %326 = vmatpush1.bf16.msra.mxu0 %v261
    %327 = vmatprep.subr.bf16.mxu0 %v266
    %328 = vmatpush1.bf16.msra.mxu0 %v265
    %329 = vmatprep.subr.bf16.mxu0 %v270
    %330 = vmatpush1.bf16.msra.mxu0 %v269
    %331 = vmatprep.subr.bf16.mxu0 %v274
    %332 = vmatpush1.bf16.msra.mxu0 %v273
    %333 = vmatprep.subr.bf16.mxu0 %v278
    %334 = vmatpush1.bf16.msra.mxu0 %v277
    %335 = vmatprep.subr.bf16.mxu0 %v282
    %336 = vmatpush1.bf16.msra.mxu0 %v281
    %337 = vmatprep.subr.bf16.mxu0 %v286
    %338 = vmatpush1.bf16.msra.mxu0 %v285
    %339 = vmatprep.subr.bf16.mxu0 %v290
    %340 = vmatpush1.bf16.msra.mxu0 %v289
    %341 = vmatprep.subr.bf16.mxu0 0
    %342 = vmatpush1.bf16.msra.mxu0 0
    %343 = vmatprep.subr.bf16.mxu0 0
    %344 = vmatpush1.bf16.msra.mxu0 0
    %345 = vmatprep.subr.bf16.mxu0 0
    %346 = vmatpush1.bf16.msra.mxu0 0
    %347 = vmatprep.subr.bf16.mxu0 0
    %348 = vmatpush1.bf16.msra.mxu0 0
    %349 = vmatprep.subr.bf16.mxu0 0
    %350 = vmatpush1.bf16.msra.mxu0 0
    %351 = vmatprep.subr.bf16.mxu0 0
    %352 = vmatpush1.bf16.msra.mxu0 0
    %353 = vmatprep.subr.bf16.mxu0 0
    %354 = vmatpush1.bf16.msra.mxu0 0
    %355 = vmatprep.subr.bf16.mxu0 0
    %356 = vmatpush1.bf16.msra.mxu0 0
    %357 = vmatprep.mubr.bf16.mxu0 0
    %358 = vmatmul.mubr.bf16.gmra.mrb[0].mxu0 %v110
    %v359 = vpop.f32.mrb[0].mxu0
    %v360 = vadd.f32 %v148, %v359
    %v361 = vpop.f32.mrb[0].mxu0
    %v362 = vadd.f32 %v152, %v361
    %v363 = vpop.f32.mrb[0].mxu0
    %v364 = vpop.f32.mrb[0].mxu0
    %365 = vdwg.mxu0
    %366 = vmatprep.subr.bf16.mxu0 %v264
    %367 = vmatpush1.bf16.msra.mxu0 %v263
    %368 = vmatprep.subr.bf16.mxu0 %v268
    %369 = vmatpush1.bf16.msra.mxu0 %v267
    %370 = vmatprep.subr.bf16.mxu0 %v272
    %371 = vmatpush1.bf16.msra.mxu0 %v271
    %372 = vmatprep.subr.bf16.mxu0 %v276
    %373 = vmatpush1.bf16.msra.mxu0 %v275
    %374 = vmatprep.subr.bf16.mxu0 %v280
    %375 = vmatpush1.bf16.msra.mxu0 %v279
    %376 = vmatprep.subr.bf16.mxu0 %v284
    %377 = vmatpush1.bf16.msra.mxu0 %v283
    %378 = vmatprep.subr.bf16.mxu0 %v288
    %379 = vmatpush1.bf16.msra.mxu0 %v287
    %380 = vmatprep.subr.bf16.mxu0 %v292
    %381 = vmatpush1.bf16.msra.mxu0 %v291
    %382 = vmatprep.subr.bf16.mxu0 0
    %383 = vmatpush1.bf16.msra.mxu0 0
    %384 = vmatprep.subr.bf16.mxu0 0
    %385 = vmatpush1.bf16.msra.mxu0 0
    %386 = vmatprep.subr.bf16.mxu0 0
    %387 = vmatpush1.bf16.msra.mxu0 0
    %388 = vmatprep.subr.bf16.mxu0 0
    %389 = vmatpush1.bf16.msra.mxu0 0
    %390 = vmatprep.subr.bf16.mxu0 0
    %391 = vmatpush1.bf16.msra.mxu0 0
    %392 = vmatprep.subr.bf16.mxu0 0
    %393 = vmatpush1.bf16.msra.mxu0 0
    %394 = vmatprep.subr.bf16.mxu0 0
    %395 = vmatpush1.bf16.msra.mxu0 0
    %396 = vmatprep.subr.bf16.mxu0 0
    %397 = vmatpush1.bf16.msra.mxu0 0
    %398 = vmatprep.mubr.bf16.mxu0 0
    %399 = vmatmul.mubr.bf16.gmra.mrb[0].mxu0 %v110
    %v400 = vpop.f32.mrb[0].mxu0
    %v401 = vadd.f32 %v156, %v400
    %v402 = vpop.f32.mrb[0].mxu0
    %v403 = vadd.f32 %v160, %v402
    %v404 = vpop.f32.mrb[0].mxu0
    %v405 = vpop.f32.mrb[0].mxu0
    %406 = vdwg.mxu0
    %v407 = vmax.f32 %v360, 0.0
    %v408 = vmax.f32 %v362, 0.0
    %v409 = vmax.f32 %v401, 0.0
    %v410 = vmax.f32 %v403, 0.0
    %v411 = vpack.c.bf16 %v407, %v407
    %v412 = vpack.c.bf16 %v408, %v408
    %v413 = vpack.c.bf16 %v409, %v409
    %v414 = vpack.c.bf16 %v410, %v410
    %v415 = vld [vmem:[#allocation6] sm:$0xf]
    %v416 = vld [vmem:[#allocation6 + $0x4] sm:$0xf]
    %v417 = vld [vmem:[#allocation6 + $0x8] sm:$0xf]
    %v418 = vld [vmem:[#allocation6 + $0xc] sm:$0xf]
    %v419 = vld [vmem:[#allocation6 + $0x10] sm:$0xf]
    %v420 = vld [vmem:[#allocation6 + $0x14] sm:$0xf]
    %v421 = vld [vmem:[#allocation6 + $0x18] sm:$0xf]
    %v422 = vld [vmem:[#allocation6 + $0x1c] sm:$0xf]
    %v423 = vld [vmem:[#allocation6 + $0x20] sm:$0xf]
    %v424 = vld [vmem:[#allocation6 + $0x24] sm:$0xf]
    %v425 = vld [vmem:[#allocation6 + $0x28] sm:$0xf]
    %v426 = vld [vmem:[#allocation6 + $0x2c] sm:$0xf]
    %v427 = vld [vmem:[#allocation6 + $0x30] sm:$0xf]
    %v428 = vld [vmem:[#allocation6 + $0x34] sm:$0xf]
    %v429 = vld [vmem:[#allocation6 + $0x38] sm:$0xf]
    %v430 = vld [vmem:[#allocation6 + $0x3c] sm:$0xf]
    %v431 = vld [vmem:[#allocation6 + $0x40] sm:$0xf]
    %v432 = vld [vmem:[#allocation6 + $0x44] sm:$0xf]
    %v433 = vld [vmem:[#allocation6 + $0x48] sm:$0xf]
    %v434 = vld [vmem:[#allocation6 + $0x4c] sm:$0xf]
    %v435 = vld [vmem:[#allocation6 + $0x50] sm:$0xf]
    %v436 = vld [vmem:[#allocation6 + $0x54] sm:$0xf]
    %v437 = vld [vmem:[#allocation6 + $0x58] sm:$0xf]
    %v438 = vld [vmem:[#allocation6 + $0x5c] sm:$0xf]
    %v439 = vld [vmem:[#allocation6 + $0x60] sm:$0xf]
    %v440 = vld [vmem:[#allocation6 + $0x64] sm:$0xf]
    %v441 = vld [vmem:[#allocation6 + $0x68] sm:$0xf]
    %v442 = vld [vmem:[#allocation6 + $0x6c] sm:$0xf]
    %v443 = vld [vmem:[#allocation6 + $0x70] sm:$0xf]
    %v444 = vld [vmem:[#allocation6 + $0x74] sm:$0xf]
    %v445 = vld [vmem:[#allocation6 + $0x78] sm:$0xf]
    %v446 = vld [vmem:[#allocation6 + $0x7c] sm:$0xf]
    %v447 = vld [vmem:[#allocation6 + $0x80] sm:$0xf]
    %v448 = vld [vmem:[#allocation6 + $0x84] sm:$0xf]
    %v449 = vld [vmem:[#allocation6 + $0x88] sm:$0xf]
    %v450 = vld [vmem:[#allocation6 + $0x8c] sm:$0xf]
    %v451 = vld [vmem:[#allocation6 + $0x90] sm:$0xf]
    %v452 = vld [vmem:[#allocation6 + $0x94] sm:$0xf]
    %v453 = vld [vmem:[#allocation6 + $0x98] sm:$0xf]
    %v454 = vld [vmem:[#allocation6 + $0x9c] sm:$0xf]
    %v455 = vld [vmem:[#allocation6 + $0xa0] sm:$0xf]
    %v456 = vld [vmem:[#allocation6 + $0xa4] sm:$0xf]
    %v457 = vld [vmem:[#allocation6 + $0xa8] sm:$0xf]
    %v458 = vld [vmem:[#allocation6 + $0xac] sm:$0xf]
    %v459 = vld [vmem:[#allocation6 + $0xb0] sm:$0xf]
    %v460 = vld [vmem:[#allocation6 + $0xb4] sm:$0xf]
    %v461 = vld [vmem:[#allocation6 + $0xb8] sm:$0xf]
    %v462 = vld [vmem:[#allocation6 + $0xbc] sm:$0xf]
    %v463 = vld [vmem:[#allocation6 + $0xc0] sm:$0xf]
    %v464 = vld [vmem:[#allocation6 + $0xc4] sm:$0xf]
    %v465 = vld [vmem:[#allocation6 + $0xc8] sm:$0xf]
    %v466 = vld [vmem:[#allocation6 + $0xcc] sm:$0xf]
    %v467 = vld [vmem:[#allocation6 + $0xd0] sm:$0xf]
    %v468 = vld [vmem:[#allocation6 + $0xd4] sm:$0xf]
    %v469 = vld [vmem:[#allocation6 + $0xd8] sm:$0xf]
    %v470 = vld [vmem:[#allocation6 + $0xdc] sm:$0xf]
    %v471 = vld [vmem:[#allocation6 + $0xe0] sm:$0xf]
    %v472 = vld [vmem:[#allocation6 + $0xe4] sm:$0xf]
    %v473 = vld [vmem:[#allocation6 + $0xe8] sm:$0xf]
    %v474 = vld [vmem:[#allocation6 + $0xec] sm:$0xf]
    %v475 = vld [vmem:[#allocation6 + $0xf0] sm:$0xf]
    %v476 = vld [vmem:[#allocation6 + $0xf4] sm:$0xf]
    %v477 = vld [vmem:[#allocation6 + $0xf8] sm:$0xf]
    %v478 = vld [vmem:[#allocation6 + $0xfc] sm:$0xf]
    %v479 = vld [vmem:[#allocation7] sm:$0x1]
    %v481 = vlaneseq
    %v482 = vshrl.u32 %v481, 7
    %v483 = vsub.s32 0, %v482
    %v484 = vrot.slane %v479, %v483
    %v550 = vunpack.c.l.b16 %v415
    %v551 = vunpack.c.l.b16 %v416
    %v552 = vunpack.c.l.b16 %v417
    %v553 = vunpack.c.l.b16 %v418
    %v554 = vunpack.c.l.b16 %v419
    %v555 = vunpack.c.l.b16 %v420
    %v556 = vunpack.c.l.b16 %v421
    %v557 = vunpack.c.l.b16 %v422
    %v558 = vunpack.c.l.b16 %v423
    %v559 = vunpack.c.l.b16 %v424
    %v560 = vunpack.c.l.b16 %v425
    %v561 = vunpack.c.l.b16 %v426
    %v562 = vunpack.c.l.b16 %v427
    %v563 = vunpack.c.l.b16 %v428
    %v564 = vunpack.c.l.b16 %v429
    %v565 = vunpack.c.l.b16 %v430
    %v566 = vunpack.c.l.b16 %v431
    %v567 = vunpack.c.l.b16 %v432
    %v568 = vunpack.c.l.b16 %v433
    %v569 = vunpack.c.l.b16 %v434
    %v570 = vunpack.c.l.b16 %v435
    %v571 = vunpack.c.l.b16 %v436
    %v572 = vunpack.c.l.b16 %v437
    %v573 = vunpack.c.l.b16 %v438
    %v574 = vunpack.c.l.b16 %v439
    %v575 = vunpack.c.l.b16 %v440
    %v576 = vunpack.c.l.b16 %v441
    %v577 = vunpack.c.l.b16 %v442
    %v578 = vunpack.c.l.b16 %v443
    %v579 = vunpack.c.l.b16 %v444
    %v580 = vunpack.c.l.b16 %v445
    %v581 = vunpack.c.l.b16 %v446
    %v582 = vunpack.c.l.b16 %v447
    %v583 = vunpack.c.l.b16 %v448
    %v584 = vunpack.c.l.b16 %v449
    %v585 = vunpack.c.l.b16 %v450
    %v586 = vunpack.c.l.b16 %v451
    %v587 = vunpack.c.l.b16 %v452
    %v588 = vunpack.c.l.b16 %v453
    %v589 = vunpack.c.l.b16 %v454
    %v590 = vunpack.c.l.b16 %v455
    %v591 = vunpack.c.l.b16 %v456
    %v592 = vunpack.c.l.b16 %v457
    %v593 = vunpack.c.l.b16 %v458
    %v594 = vunpack.c.l.b16 %v459
    %v595 = vunpack.c.l.b16 %v460
    %v596 = vunpack.c.l.b16 %v461
    %v597 = vunpack.c.l.b16 %v462
    %v598 = vunpack.c.l.b16 %v463
    %v599 = vunpack.c.l.b16 %v464
    %v600 = vunpack.c.l.b16 %v465
    %v601 = vunpack.c.l.b16 %v466
    %v602 = vunpack.c.l.b16 %v467
    %v603 = vunpack.c.l.b16 %v468
    %v604 = vunpack.c.l.b16 %v469
    %v605 = vunpack.c.l.b16 %v470
    %v606 = vunpack.c.l.b16 %v471
    %v607 = vunpack.c.l.b16 %v472
    %v608 = vunpack.c.l.b16 %v473
    %v609 = vunpack.c.l.b16 %v474
    %v610 = vunpack.c.l.b16 %v475
    %v611 = vunpack.c.l.b16 %v476
    %v612 = vunpack.c.l.b16 %v477
    %v613 = vunpack.c.l.b16 %v478
    %v614 = vpack.c.b16 %v551, %v550
    %v615 = vpack.c.b16 %v553, %v552
    %v616 = vpack.c.b16 %v555, %v554
    %v617 = vpack.c.b16 %v557, %v556
    %v618 = vpack.c.b16 %v559, %v558
    %v619 = vpack.c.b16 %v561, %v560
    %v620 = vpack.c.b16 %v563, %v562
    %v621 = vpack.c.b16 %v565, %v564
    %v622 = vpack.c.b16 %v567, %v566
    %v623 = vpack.c.b16 %v569, %v568
    %v624 = vpack.c.b16 %v571, %v570
    %v625 = vpack.c.b16 %v573, %v572
    %v626 = vpack.c.b16 %v575, %v574
    %v627 = vpack.c.b16 %v577, %v576
    %v628 = vpack.c.b16 %v579, %v578
    %v629 = vpack.c.b16 %v581, %v580
    %v630 = vpack.c.b16 %v583, %v582
    %v631 = vpack.c.b16 %v585, %v584
    %v632 = vpack.c.b16 %v587, %v586
    %v633 = vpack.c.b16 %v589, %v588
    %v634 = vpack.c.b16 %v591, %v590
    %v635 = vpack.c.b16 %v593, %v592
    %v636 = vpack.c.b16 %v595, %v594
    %v637 = vpack.c.b16 %v597, %v596
    %v638 = vpack.c.b16 %v599, %v598
    %v639 = vpack.c.b16 %v601, %v600
    %v640 = vpack.c.b16 %v603, %v602
    %v641 = vpack.c.b16 %v605, %v604
    %v642 = vpack.c.b16 %v607, %v606
    %v643 = vpack.c.b16 %v609, %v608
    %v644 = vpack.c.b16 %v611, %v610
    %v645 = vpack.c.b16 %v613, %v612
    %678 = vmatprep.subr.bf16.mxu0 0
    %679 = vmatpush1.bf16.msra.mxu0 %v614
    %680 = vmatprep.subr.bf16.mxu0 0
    %681 = vmatpush1.bf16.msra.mxu0 %v615
    %682 = vmatprep.subr.bf16.mxu0 0
    %683 = vmatpush1.bf16.msra.mxu0 %v616
    %684 = vmatprep.subr.bf16.mxu0 0
    %685 = vmatpush1.bf16.msra.mxu0 %v617
    %686 = vmatprep.subr.bf16.mxu0 0
    %687 = vmatpush1.bf16.msra.mxu0 %v618
    %688 = vmatprep.subr.bf16.mxu0 0
    %689 = vmatpush1.bf16.msra.mxu0 %v619
    %690 = vmatprep.subr.bf16.mxu0 0
    %691 = vmatpush1.bf16.msra.mxu0 %v620
    %692 = vmatprep.subr.bf16.mxu0 0
    %693 = vmatpush1.bf16.msra.mxu0 %v621
    %694 = vmatprep.subr.bf16.mxu0 0
    %695 = vmatpush1.bf16.msra.mxu0 %v622
    %696 = vmatprep.subr.bf16.mxu0 0
    %697 = vmatpush1.bf16.msra.mxu0 %v623
    %698 = vmatprep.subr.bf16.mxu0 0
    %699 = vmatpush1.bf16.msra.mxu0 %v624
    %700 = vmatprep.subr.bf16.mxu0 0
    %701 = vmatpush1.bf16.msra.mxu0 %v625
    %702 = vmatprep.subr.bf16.mxu0 0
    %703 = vmatpush1.bf16.msra.mxu0 %v626
    %704 = vmatprep.subr.bf16.mxu0 0
    %705 = vmatpush1.bf16.msra.mxu0 %v627
    %706 = vmatprep.subr.bf16.mxu0 0
    %707 = vmatpush1.bf16.msra.mxu0 %v628
    %708 = vmatprep.subr.bf16.mxu0 0
    %709 = vmatpush1.bf16.msra.mxu0 %v629
    %710 = vmatprep.mubr.bf16.mxu0 %v412
    %711 = vmatmul.mubr.bf16.gmra.mrb[0].mxu0 %v411
    %v712 = vpop.f32.mrb[0].mxu0
    %v713 = vadd.f32 %v484, %v712
    %v714 = vpop.f32.mrb[0].mxu0
    %v715 = vpop.f32.mrb[0].mxu0
    %v716 = vpop.f32.mrb[0].mxu0
    %717 = vdwg.mxu0
    %718 = vmatprep.subr.bf16.mxu0 0
    %719 = vmatpush1.bf16.msra.mxu0 %v630
    %720 = vmatprep.subr.bf16.mxu0 0
    %721 = vmatpush1.bf16.msra.mxu0 %v631
    %722 = vmatprep.subr.bf16.mxu0 0
    %723 = vmatpush1.bf16.msra.mxu0 %v632
    %724 = vmatprep.subr.bf16.mxu0 0
    %725 = vmatpush1.bf16.msra.mxu0 %v633
    %726 = vmatprep.subr.bf16.mxu0 0
    %727 = vmatpush1.bf16.msra.mxu0 %v634
    %728 = vmatprep.subr.bf16.mxu0 0
    %729 = vmatpush1.bf16.msra.mxu0 %v635
    %730 = vmatprep.subr.bf16.mxu0 0
    %731 = vmatpush1.bf16.msra.mxu0 %v636
    %732 = vmatprep.subr.bf16.mxu0 0
    %733 = vmatpush1.bf16.msra.mxu0 %v637
    %734 = vmatprep.subr.bf16.mxu0 0
    %735 = vmatpush1.bf16.msra.mxu0 %v638
    %736 = vmatprep.subr.bf16.mxu0 0
    %737 = vmatpush1.bf16.msra.mxu0 %v639
    %738 = vmatprep.subr.bf16.mxu0 0
    %739 = vmatpush1.bf16.msra.mxu0 %v640
    %740 = vmatprep.subr.bf16.mxu0 0
    %741 = vmatpush1.bf16.msra.mxu0 %v641
    %742 = vmatprep.subr.bf16.mxu0 0
    %743 = vmatpush1.bf16.msra.mxu0 %v642
    %744 = vmatprep.subr.bf16.mxu0 0
    %745 = vmatpush1.bf16.msra.mxu0 %v643
    %746 = vmatprep.subr.bf16.mxu0 0
    %747 = vmatpush1.bf16.msra.mxu0 %v644
    %748 = vmatprep.subr.bf16.mxu0 0
    %749 = vmatpush1.bf16.msra.mxu0 %v645
    %750 = vmatprep.mubr.bf16.mxu0 %v414
    %751 = vmatmul.mubr.bf16.gmra.mrb[0].mxu0 %v413
    %v752 = vpop.f32.mrb[0].mxu0
    %v753 = vadd.f32 %v713, %v752
    %v754 = vpop.f32.mrb[0].mxu0
    %v755 = vpop.f32.mrb[0].mxu0
    %v756 = vpop.f32.mrb[0].mxu0
    %757 = vdwg.mxu0
    %v758 = vmax.f32 %v753, 0.0
    %v759 = vpack.c.bf16 %v758, %v758
    %v760 = vld [vmem:[#allocation9] sm:$0xf]
    %v761 = vld [vmem:[#allocation9 + $0x4] sm:$0xf]
    %v762 = vld [vmem:[#allocation9 + $0x8] sm:$0xf]
    %v763 = vld [vmem:[#allocation9 + $0xc] sm:$0xf]
    %v764 = vld [vmem:[#allocation9 + $0x10] sm:$0xf]
    %v765 = vld [vmem:[#allocation9 + $0x14] sm:$0xf]
    %v766 = vld [vmem:[#allocation9 + $0x18] sm:$0xf]
    %v767 = vld [vmem:[#allocation9 + $0x1c] sm:$0xf]
    %v768 = vld [vmem:[#allocation9 + $0x20] sm:$0xf]
    %v769 = vld [vmem:[#allocation9 + $0x24] sm:$0xf]
    %v770 = vld [vmem:[#allocation9 + $0x28] sm:$0xf]
    %v771 = vld [vmem:[#allocation9 + $0x2c] sm:$0xf]
    %v772 = vld [vmem:[#allocation9 + $0x30] sm:$0xf]
    %v773 = vld [vmem:[#allocation9 + $0x34] sm:$0xf]
    %v774 = vld [vmem:[#allocation9 + $0x38] sm:$0xf]
    %v775 = vld [vmem:[#allocation9 + $0x3c] sm:$0xf]
    %v776 = vld [vmem:[#allocation10] sm:$0x1]
    %v778 = vlaneseq
    %v779 = vshrl.u32 %v778, 7
    %v780 = vsub.s32 0, %v779
    %v781 = vrot.slane %v776, %v780
    %v799 = vunpack.c.l.b16 %v760
    %v800 = vunpack.c.l.b16 %v761
    %v801 = vunpack.c.l.b16 %v762
    %v802 = vunpack.c.l.b16 %v763
    %v803 = vunpack.c.l.b16 %v764
    %v804 = vunpack.c.l.b16 %v765
    %v805 = vunpack.c.l.b16 %v766
    %v806 = vunpack.c.l.b16 %v767
    %v807 = vunpack.c.l.b16 %v768
    %v808 = vunpack.c.l.b16 %v769
    %v809 = vunpack.c.l.b16 %v770
    %v810 = vunpack.c.l.b16 %v771
    %v811 = vunpack.c.l.b16 %v772
    %v812 = vunpack.c.l.b16 %v773
    %v813 = vunpack.c.l.b16 %v774
    %v814 = vunpack.c.l.b16 %v775
    %v815 = vpack.c.b16 %v800, %v799
    %v816 = vpack.c.b16 %v802, %v801
    %v817 = vpack.c.b16 %v804, %v803
    %v818 = vpack.c.b16 %v806, %v805
    %v819 = vpack.c.b16 %v808, %v807
    %v820 = vpack.c.b16 %v810, %v809
    %v821 = vpack.c.b16 %v812, %v811
    %v822 = vpack.c.b16 %v814, %v813
    %831 = vmatprep.subr.bf16.mxu0 0
    %832 = vmatpush1.bf16.msra.mxu0 %v815
    %833 = vmatprep.subr.bf16.mxu0 0
    %834 = vmatpush1.bf16.msra.mxu0 %v816
    %835 = vmatprep.subr.bf16.mxu0 0
    %836 = vmatpush1.bf16.msra.mxu0 %v817
    %837 = vmatprep.subr.bf16.mxu0 0
    %838 = vmatpush1.bf16.msra.mxu0 %v818
    %839 = vmatprep.subr.bf16.mxu0 0
    %840 = vmatpush1.bf16.msra.mxu0 %v819
    %841 = vmatprep.subr.bf16.mxu0 0
    %842 = vmatpush1.bf16.msra.mxu0 %v820
    %843 = vmatprep.subr.bf16.mxu0 0
    %844 = vmatpush1.bf16.msra.mxu0 %v821
    %845 = vmatprep.subr.bf16.mxu0 0
    %846 = vmatpush1.bf16.msra.mxu0 %v822
    %847 = vmatprep.subr.bf16.mxu0 0
    %848 = vmatpush1.bf16.msra.mxu0 0
    %849 = vmatprep.subr.bf16.mxu0 0
    %850 = vmatpush1.bf16.msra.mxu0 0
    %851 = vmatprep.subr.bf16.mxu0 0
    %852 = vmatpush1.bf16.msra.mxu0 0
    %853 = vmatprep.subr.bf16.mxu0 0
    %854 = vmatpush1.bf16.msra.mxu0 0
    %855 = vmatprep.subr.bf16.mxu0 0
    %856 = vmatpush1.bf16.msra.mxu0 0
    %857 = vmatprep.subr.bf16.mxu0 0
    %858 = vmatpush1.bf16.msra.mxu0 0
    %859 = vmatprep.subr.bf16.mxu0 0
    %860 = vmatpush1.bf16.msra.mxu0 0
    %861 = vmatprep.subr.bf16.mxu0 0
    %862 = vmatpush1.bf16.msra.mxu0 0
    %863 = vmatprep.mubr.bf16.mxu0 0
    %864 = vmatmul.mubr.bf16.gmra.mrb[0].mxu0 %v759
    %v865 = vpop.f32.mrb[0].mxu0
    %v866 = vadd.f32 %v781, %v865
    %v867 = vpop.f32.mrb[0].mxu0
    %v868 = vpop.f32.mrb[0].mxu0
    %v869 = vpop.f32.mrb[0].mxu0
    %870 = vdwg.mxu0
    %v871 = vmax.f32 %v866, 0.0
    %v872 = vpack.c.bf16 %v871, %v871
    %v873 = vld [vmem:[%s7] sm:$0xf]
    %v874 = vld [vmem:[%s7 + $0x4] sm:$0xf]
    %v875 = vld [vmem:[%s7 + $0x8] sm:$0xf]
    %v876 = vld [vmem:[%s7 + $0xc] sm:$0xf]
    %v877 = vld [vmem:[%s7 + $0x10] sm:$0xf]
    %v878 = vld [vmem:[%s7 + $0x14] sm:$0xf]
    %v879 = vld [vmem:[%s7 + $0x18] sm:$0xf]
    %v880 = vld [vmem:[%s7 + $0x1c] sm:$0xf]
    %v881 = vld [vmem:[%s7 + $0x20] sm:$0xf]
    %v882 = vld [vmem:[%s7 + $0x24] sm:$0xf]
    %v883 = vld [vmem:[%s7 + $0x28] sm:$0xf]
    %v884 = vld [vmem:[%s7 + $0x2c] sm:$0xf]
    %v885 = vld [vmem:[%s7 + $0x30] sm:$0xf]
    %v886 = vld [vmem:[%s7 + $0x34] sm:$0xf]
    %v887 = vld [vmem:[%s7 + $0x38] sm:$0xf]
    %v888 = vld [vmem:[%s7 + $0x3c] sm:$0xf]
    %v889 = vld [vmem:[%s8] sm:$0x1]
    %v891 = vlaneseq
    %v892 = vshrl.u32 %v891, 7
    %v893 = vsub.s32 0, %v892
    %v894 = vrot.slane %v889, %v893
    %v912 = vunpack.c.l.b16 %v873
    %v913 = vunpack.c.l.b16 %v874
    %v914 = vunpack.c.l.b16 %v875
    %v915 = vunpack.c.l.b16 %v876
    %v916 = vunpack.c.l.b16 %v877
    %v917 = vunpack.c.l.b16 %v878
    %v918 = vunpack.c.l.b16 %v879
    %v919 = vunpack.c.l.b16 %v880
    %v920 = vunpack.c.l.b16 %v881
    %v921 = vunpack.c.l.b16 %v882
    %v922 = vunpack.c.l.b16 %v883
    %v923 = vunpack.c.l.b16 %v884
    %v924 = vunpack.c.l.b16 %v885
    %v925 = vunpack.c.l.b16 %v886
    %v926 = vunpack.c.l.b16 %v887
    %v927 = vunpack.c.l.b16 %v888
    %v928 = vpack.c.b16 %v913, %v912
    %v929 = vpack.c.b16 %v915, %v914
    %v930 = vpack.c.b16 %v917, %v916
    %v931 = vpack.c.b16 %v919, %v918
    %v932 = vpack.c.b16 %v921, %v920
    %v933 = vpack.c.b16 %v923, %v922
    %v934 = vpack.c.b16 %v925, %v924
    %v935 = vpack.c.b16 %v927, %v926
    %944 = vmatprep.subr.bf16.mxu0 0
    %945 = vmatpush1.bf16.msra.mxu0 %v928
    %946 = vmatprep.subr.bf16.mxu0 0
    %947 = vmatpush1.bf16.msra.mxu0 %v929
    %948 = vmatprep.subr.bf16.mxu0 0
    %949 = vmatpush1.bf16.msra.mxu0 %v930
    %950 = vmatprep.subr.bf16.mxu0 0
    %951 = vmatpush1.bf16.msra.mxu0 %v931
    %952 = vmatprep.subr.bf16.mxu0 0
    %953 = vmatpush1.bf16.msra.mxu0 %v932
    %954 = vmatprep.subr.bf16.mxu0 0
    %955 = vmatpush1.bf16.msra.mxu0 %v933
    %956 = vmatprep.subr.bf16.mxu0 0
    %957 = vmatpush1.bf16.msra.mxu0 %v934
    %958 = vmatprep.subr.bf16.mxu0 0
    %959 = vmatpush1.bf16.msra.mxu0 %v935
    %960 = vmatprep.subr.bf16.mxu0 0
    %961 = vmatpush1.bf16.msra.mxu0 0
    %962 = vmatprep.subr.bf16.mxu0 0
    %963 = vmatpush1.bf16.msra.mxu0 0
    %964 = vmatprep.subr.bf16.mxu0 0
    %965 = vmatpush1.bf16.msra.mxu0 0
    %966 = vmatprep.subr.bf16.mxu0 0
    %967 = vmatpush1.bf16.msra.mxu0 0
    %968 = vmatprep.subr.bf16.mxu0 0
    %969 = vmatpush1.bf16.msra.mxu0 0
    %970 = vmatprep.subr.bf16.mxu0 0
    %971 = vmatpush1.bf16.msra.mxu0 0
    %972 = vmatprep.subr.bf16.mxu0 0
    %973 = vmatpush1.bf16.msra.mxu0 0
    %974 = vmatprep.subr.bf16.mxu0 0
    %975 = vmatpush1.bf16.msra.mxu0 0
    %976 = vmatprep.mubr.bf16.mxu0 0
    %977 = vmatmul.mubr.bf16.gmra.mrb[0].mxu0 %v872
    %v978 = vpop.f32.mrb[0].mxu0
    %v979 = vadd.f32 %v894, %v978
    %v980 = vpop.f32.mrb[0].mxu0
    %v981 = vpop.f32.mrb[0].mxu0
    %v982 = vpop.f32.mrb[0].mxu0
    %983 = vdwg.mxu0
    %v984 = vlaneseq
    %v985 = vand.u32 %v984, 127
    %vm986 = vcmp.ge.s32.totalorder %v985, 4
    %v987 = vmax.f32 %v979, 0.0
    %v988 = vsub.f32 %v987, 2.0
    %v989 = vsel %vm986, %v988, %v979
    %990 = vst [vmem:[%s9] sm:$0xff] %v989
    // Predicated region
    $region62: #{po_standard_net_forward.1} parent=1 // pred_check
      _
    $region63: #{po_standard_net_forward.1} parent=1 // pred_check_branch
      %992 = sbr.rel (0) target = $region65
    $region64: #{po_standard_net_forward.1} parent=1 // pred_region
      _
    $region65: #{po_standard_net_forward.1} parent=1 // pred_fallthru
      _
    // Predicated region
    $region66: #{po_standard_net_forward.1} parent=1 // pred_check
      _
    $region67: #{po_standard_net_forward.1} parent=1 // pred_check_branch
      %994 = sbr.rel (0) target = $region69
    $region68: #{po_standard_net_forward.1} parent=1 // pred_region
      _
    $region69: #{po_standard_net_forward.1} parent=1 // pred_fallthru
      _
    %995 = vsyncpa [#allocation3], 1
    %996 = vsyncpa [#allocation5], 1
    %997 = vsyncpa [#allocation8], 1
    %998 = vsyncpa [#allocation11], 1

</llo_original>
